<compile_context>
chip_gen: v7x
topology: tpu7x:2x2x1
jax: 0.10.0
libtpu: 0.0.40
codegen_flags: <defaults>
</compile_context>

<pallas_src>
import math

import jax
import jax.numpy as jnp
from jax.experimental import pallas as pl
from jax.experimental.pallas import tpu as pltpu


def _cse_linear_kernel(x_ref, w_ref, b_ref, gamma_ref, beta_ref):
    # x_ref:     (1, K, T)  NCHW-native pixel block (channels x pixels)
    # w_ref:     (2C, K)    fused, equalized-LR-scaled weights (resident)
    # b_ref:     (2C, 1)    fused f32 bias; gamma half already includes the +1
    # gamma_ref: (1, C, T)  beta_ref: (1, C, T)   both float32
    C = gamma_ref.shape[1]
    x = x_ref[0]                                 # (K, T)
    acc = jax.lax.dot_general(                   # (2C, T), f32 accumulation on MXU
        w_ref[...], x,
        dimension_numbers=(((1,), (0,)), ((), ())),
        preferred_element_type=jnp.float32)
    acc = acc + b_ref[...]                       # bias broadcast across lanes
    gamma_ref[0] = acc[:C].astype(gamma_ref.dtype)
    beta_ref[0] = acc[C:].astype(beta_ref.dtype)


def cse_linear(embedding, weight, bias, num_features, *, t_hw=1024,
               compute_dtype=jnp.bfloat16):
    """CSELinear forward.

    embedding: [N, w_dim, H, W] (NCHW). weight: [2C, w_dim, 1, 1]. bias: [2C].
    Returns (gamma, beta), each [N, C, H, W] float32, gamma = conv_gamma + 1.
    """
    N, K, H, W = embedding.shape
    C = num_features
    assert weight.shape == (2 * C, K, 1, 1)
    assert bias.shape == (2 * C,)
    HW = H * W

    # Equalized-LR 1x1-conv scaling (fan_in = K); fuse gamma/beta weight halves
    # into one [2C, K] matrix so a single MXU matmul produces both outputs.
    w_gain = 1.0 / math.sqrt(K)
    w2d = (weight.reshape(2 * C, K).astype(jnp.float32) * w_gain)
    w2d = w2d.astype(compute_dtype)
    # Fold the "+1" on gamma into the gamma bias (added in f32 post-matmul).
    b = bias.astype(jnp.float32).at[:C].add(1.0).reshape(2 * C, 1)

    # Keep NCHW: only flatten the spatial dims (free reshape, no transpose).
    x = embedding.reshape(N, K, HW).astype(compute_dtype)

    # Pixel tile along the lane dimension: multiple of 128 (lane-dense stores),
    # or the full extent when HW is not 128-aligned / small.  VMEM footprint of
    # the double-buffered tiles is tiny for these shapes (< a few MiB), well
    # inside the default scoped limit on v5e/v6e/v7x.
    if HW % 128 == 0:
        t = max(128, min((t_hw // 128) * 128, HW))
    else:
        t = HW
    grid = (N, pl.cdiv(HW, t))

    gamma, beta = pl.pallas_call(
        _cse_linear_kernel,
        out_shape=(
            jax.ShapeDtypeStruct((N, C, HW), jnp.float32),   # gamma (+1 folded in)
            jax.ShapeDtypeStruct((N, C, HW), jnp.float32),   # beta
        ),
        grid_spec=pltpu.PrefetchScalarGridSpec(
            num_scalar_prefetch=0,
            grid=grid,
            in_specs=[
                pl.BlockSpec((1, K, t), lambda n, j: (n, 0, j)),   # x pixel tile
                pl.BlockSpec((2 * C, K), lambda n, j: (0, 0)),     # fused weights
                pl.BlockSpec((2 * C, 1), lambda n, j: (0, 0)),     # fused bias
            ],
            out_specs=[
                pl.BlockSpec((1, C, t), lambda n, j: (n, 0, j)),
                pl.BlockSpec((1, C, t), lambda n, j: (n, 0, j)),
            ],
        ),
        compiler_params=pltpu.CompilerParams(
            dimension_semantics=("parallel", "parallel")),
    )(x, w2d, b)

    # Free reshapes back to NCHW image layout; no transposes, no slices.
    return gamma.reshape(N, C, H, W), beta.reshape(N, C, H, W)


def _reference(embedding, weight, bias, num_features):
    """Pure-JAX f32 reference of CSELinear.forward."""
    N, K, H, W = embedding.shape
    C = num_features
    w_gain = 1.0 / math.sqrt(K)
    w2d = weight.reshape(2 * C, K).astype(jnp.float32) * w_gain       # [2C, K]
    x = embedding.astype(jnp.float32)
    out = jnp.einsum('nkhw,ok->nohw', x, w2d) \
        + bias.astype(jnp.float32).reshape(1, 2 * C, 1, 1)
    return out[:, :C] + 1.0, out[:, C:]


if __name__ == "__main__":
    # Module-consistent small shapes: batch=2, w_dim=32, num_features=16, 16x16 spatial.
    N, w_dim, H, W = 2, 32, 16, 16
    num_features = 16

    key = jax.random.PRNGKey(0)
    k_x, k_w, k_b = jax.random.split(key, 3)
    embedding = jax.random.normal(k_x, (N, w_dim, H, W), dtype=jnp.float32)
    weight = jax.random.normal(k_w, (2 * num_features, w_dim, 1, 1),
                               dtype=jnp.float32)
    # Nonzero bias so the bias-add path (and the +1 fold into gamma bias) is exercised.
    bias = 0.1 * jax.random.normal(k_b, (2 * num_features,), dtype=jnp.float32)

    # t_hw=128 here just to exercise the multi-tile HW grid at this small size.
    gamma, beta = cse_linear(embedding, weight, bias, num_features, t_hw=128)
    gamma, beta = jax.block_until_ready((gamma, beta))

    g_ref, b_ref = _reference(embedding, weight, bias, num_features)
    assert gamma.shape == (N, num_features, H, W)
    assert beta.shape == (N, num_features, H, W)
    # bf16 inputs + f32 accumulation: loosened tolerance vs. the pure-f32 reference.
    assert jnp.allclose(gamma, g_ref, atol=5e-2, rtol=5e-2)
    assert jnp.allclose(beta, b_ref, atol=5e-2, rtol=5e-2)

    print("KERNEL_OK")
</pallas_src>

<mosaic_0001>
module attributes {stable_mosaic.version = 11 : i64} {
  func.func @_cse_linear_kernel(%arg0: i32, %arg1: i32, %arg2: memref<1x32x128xbf16, #tpu.memory_space<vmem>>, %arg3: memref<32x32xbf16, #tpu.memory_space<vmem>>, %arg4: memref<32x1xf32, #tpu.memory_space<vmem>>, %arg5: memref<1x16x128xf32, #tpu.memory_space<vmem>>, %arg6: memref<1x16x128xf32, #tpu.memory_space<vmem>>) attributes {dimension_semantics = [#tpu.dimension_semantics<parallel>, #tpu.dimension_semantics<parallel>], iteration_bounds = array<i64: 2, 2>, scalar_prefetch = 0 : i64, scratch_operands = 0 : i64, tpu.core_type = #tpu.core_type<tc>, window_params = [{transform_indices = @transform_0, window_bounds = array<i64: 1, 32, 128>}, {pipeline_mode = #tpu.pipeline_mode<synchronous>, transform_indices = @transform_1, window_bounds = array<i64: 32, 32>}, {pipeline_mode = #tpu.pipeline_mode<synchronous>, transform_indices = @transform_2, window_bounds = array<i64: 32, 1>}, {transform_indices = @transform_3, window_bounds = array<i64: 1, 16, 128>}, {transform_indices = @transform_4, window_bounds = array<i64: 1, 16, 128>}]} {
    %c0 = arith.constant 0 : index
    %c0_0 = arith.constant 0 : index
    %c0_1 = arith.constant 0 : index
    %0 = vector.load %arg2[%c0, %c0_0, %c0_1] : memref<1x32x128xbf16, #tpu.memory_space<vmem>>, vector<1x32x128xbf16>
    %1 = vector.shape_cast %0 : vector<1x32x128xbf16> to vector<32x128xbf16>
    %c0_2 = arith.constant 0 : index
    %c0_3 = arith.constant 0 : index
    %2 = vector.load %arg3[%c0_2, %c0_3] : memref<32x32xbf16, #tpu.memory_space<vmem>>, vector<32x32xbf16>
    %cst = arith.constant dense<0.000000e+00> : vector<32x128xf32>
    %3 = tpu.matmul %2, %1, %cst {dimension_numbers = #tpu.dot_dimension_numbers<[1], [0], [0], [1], [0, 0, 1, 1], [], []>} : vector<32x32xbf16>, vector<32x128xbf16>, vector<32x128xf32> -> vector<32x128xf32>
    %c0_4 = arith.constant 0 : index
    %c0_5 = arith.constant 0 : index
    %4 = vector.load %arg4[%c0_4, %c0_5] : memref<32x1xf32, #tpu.memory_space<vmem>>, vector<32x1xf32>
    %5 = vector.broadcast %4 : vector<32x1xf32> to vector<32x128xf32>
    %6 = arith.addf %3, %5 : vector<32x128xf32>
    %7 = vector.extract_strided_slice %6 {offsets = [0, 0], sizes = [16, 128], strides = [1, 1]} : vector<32x128xf32> to vector<16x128xf32>
    %c0_6 = arith.constant 0 : index
    %c0_7 = arith.constant 0 : index
    %c0_8 = arith.constant 0 : index
    %8 = vector.load %arg5[%c0_6, %c0_7, %c0_8] : memref<1x16x128xf32, #tpu.memory_space<vmem>>, vector<1x16x128xf32>
    %9 = vector.shape_cast %8 : vector<1x16x128xf32> to vector<16x128xf32>
    %10 = vector.shape_cast %7 : vector<16x128xf32> to vector<1x16x128xf32>
    tpu.vector_store %arg5[%c0_6, %c0_7, %c0_8], %10 {strides = array<i32>} : memref<1x16x128xf32, #tpu.memory_space<vmem>>, vector<1x16x128xf32>,
    %11 = vector.extract_strided_slice %6 {offsets = [16, 0], sizes = [16, 128], strides = [1, 1]} : vector<32x128xf32> to vector<16x128xf32>
    %c0_9 = arith.constant 0 : index
    %c0_10 = arith.constant 0 : index
    %c0_11 = arith.constant 0 : index
    %12 = vector.load %arg6[%c0_9, %c0_10, %c0_11] : memref<1x16x128xf32, #tpu.memory_space<vmem>>, vector<1x16x128xf32>
    %13 = vector.shape_cast %12 : vector<1x16x128xf32> to vector<16x128xf32>
    %14 = vector.shape_cast %11 : vector<16x128xf32> to vector<1x16x128xf32>
    tpu.vector_store %arg6[%c0_9, %c0_10, %c0_11], %14 {strides = array<i32>} : memref<1x16x128xf32, #tpu.memory_space<vmem>>, vector<1x16x128xf32>,
    return
  }
  func.func @transform_0(%arg0: i32, %arg1: i32) -> (i32, i32, i32) {
    %c0_i32 = arith.constant 0 : i32
    %c0_i32_0 = arith.constant 0 : i32
    return %arg0, %c0_i32, %arg1 : i32, i32, i32
  }
  func.func @transform_1(%arg0: i32, %arg1: i32) -> (i32, i32) {
    %c0_i32 = arith.constant 0 : i32
    %c0_i32_0 = arith.constant 0 : i32
    %c0_i32_1 = arith.constant 0 : i32
    return %c0_i32, %c0_i32_0 : i32, i32
  }
  func.func @transform_2(%arg0: i32, %arg1: i32) -> (i32, i32) {
    %c0_i32 = arith.constant 0 : i32
    %c0_i32_0 = arith.constant 0 : i32
    %c0_i32_1 = arith.constant 0 : i32
    return %c0_i32, %c0_i32_0 : i32, i32
  }
  func.func @transform_3(%arg0: i32, %arg1: i32) -> (i32, i32, i32) {
    %c0_i32 = arith.constant 0 : i32
    %c0_i32_0 = arith.constant 0 : i32
    return %arg0, %c0_i32, %arg1 : i32, i32, i32
  }
  func.func @transform_4(%arg0: i32, %arg1: i32) -> (i32, i32, i32) {
    %c0_i32 = arith.constant 0 : i32
    %c0_i32_0 = arith.constant 0 : i32
    return %arg0, %c0_i32, %arg1 : i32, i32, i32
  }
}

</mosaic_0001>

<llo_original>
// kernel: tpu_custom_call.1
$region0: #{tpu_custom_call.1}
  #allocation0 [shape = 'u32[]', space=smem, size = 0x4, offset = 0x4, fixed_abs, tag = 'smem constant byte address 0x4 - core index']
  #allocation1 [shape = 'u32[144,128]{1,0:T(1,128)}', space=vmem, size = 0x12000, scoped, tag = 'internal scratch']
  %s0 = inlined_call_operand.hbm [shape: bf16[2,32,256], index: 0, kind: input, shape index: {}]
  %s1 = inlined_call_operand.vmem [shape: bf16[32,32], index: 1, kind: input, shape index: {}]
  %s2 = inlined_call_operand.vmem [shape: f32[32,1], index: 2, kind: input, shape index: {}]
  %s3 = inlined_call_operand.hbm [shape: f32[2,16,256], index: 3, kind: output, shape index: {0}]
  %s4 = inlined_call_operand.hbm [shape: f32[2,16,256], index: 4, kind: output, shape index: {1}]
  %5 = xla_tuple %s3, %s4
  %s6 = sld [smem:[#allocation0]]
  $region57: #{tpu_custom_call.1} parent=0
    _
  %s8 = ssub.s32 1, %s6
  %s9 = scalar_select 0, %s8, %s6
  $region1: #{tpu_custom_call.1} parent=0
    #allocation2 [shape = 'u8[16384]{0}', space=vmem, size = 0x4000, scoped, tag = 'input window, operand 0']
    #allocation3 [shape = 's32[2]{0}', space=sflag, size = 0x8, scoped, tag = 'scoped memory for tpu_custom_call.1']
    #allocation4 [shape = 's32[2]{0}', space=sflag, size = 0x8, scoped, tag = 'scoped memory for tpu_custom_call.1']
    #allocation5 [shape = 'u8[16384]{0}', space=vmem, size = 0x4000, scoped, tag = 'output window, operand 0']
    #allocation6 [shape = 'u8[16384]{0}', space=vmem, size = 0x4000, scoped, tag = 'output window, operand 1']
    #allocation7 [shape = 's32[2]{0}', space=sflag, size = 0x8, scoped, tag = 'scoped memory for tpu_custom_call.1']
    %10 = vsyncpa [#allocation3], 0
    %s11 = scalar_lea.sflag [#allocation3], 1
    %12 = vsyncpa %s11, 0
    %13 = vsyncpa [#allocation4], 0
    %s14 = scalar_lea.sflag [#allocation4], 1
    %15 = vsyncpa %s14, 0
    %16 = vsyncpa [#allocation7], 0
    %s17 = scalar_lea.sflag [#allocation7], 1
    %18 = vsyncpa %s17, 0
    loop: start=0, step=1, limit=6
    $region2: #{tpu_custom_call.1} parent=1 // loop_pre_header
      _
    $region3: #{tpu_custom_call.1} parent=1 // loop_header
      %s20 = sphi 0, %s24
      %p21 = scmp.ge.s32.totalorder %s20, 6
      %s27 = sphi 0, %s39
      %s28 = sphi 0, %s35
      %s29 = sphi 0, %s27
      %s30 = sphi 0, %s28
      %s31 = sphi 0, %s29
      %s32 = sphi 0, %s30
      %s44 = sphi 0, %s46
      %s47 = sphi 0, %s44
      %s48 = sphi 0, %s47
      %s64 = sphi 0, %s48
      %s68 = sphi 0, %s68
      %s70 = sphi 0, %s68
      %s71 = sphi 0, %s70
      %s85 = sphi 0, %s71
      %s89 = sphi 0, %s89
      %s91 = sphi 0, %s89
      %s92 = sphi 0, %s91
      %s106 = sphi 0, %s92
      %s114 = sphi 0, %s116
      %s117 = sphi 0, %s114
      %s118 = sphi 0, %s117
      %s134 = sphi 0, %s118
      %s142 = sphi 0, %s144
      %s145 = sphi 0, %s142
      %s146 = sphi 0, %s145
      %s162 = sphi 0, %s146
    $region4: #{tpu_custom_call.1} parent=1 // loop_header_branch
      %23 = sbr.rel (%p21) target = $region8
    $region5: #{tpu_custom_call.1} parent=1 // loop_body
      %s25 = ssub.s32 %s20, 1
      %s26 = ssub.s32 %s20, 2
      %s33 = sadd.s32 1, %s28
      %p34 = scmp.ge.s32.totalorder %s33, 2
      %s35 = scalar_select %p34, 0, %s33
      %s36 = sadd.s32 1, %s27
      %s37 = scalar_select %p34, %s36, %s27
      %p38 = scmp.ge.s32.totalorder %s37, 2
      %s39 = scalar_select %p38, 0, %s37
      %s40 = ssub.s32 %s27, %s39
      %s41 = ssub.s32 %s28, %s35
      %s42 = sor.u32 %s40, %s41
      %p43 = scmp.eq.s32.totalorder %s42, 0
      %s45 = sadd.s32 %s44, 1
      %s46 = scalar_select %p43, %s44, %s45
      %p49 = pneg %p43
      %p50 = scmp.eq.s32.totalorder %s20, 3
      %p51 = por %p49, %p50
      %p52 = scmp.ne.s32.totalorder %s44, %s47
      %p53 = scmp.eq.s32.totalorder %s20, 0
      %p54 = por %p52, %p53
      %p55 = scmp.ne.s32.totalorder %s44, %s47
      %p56 = scmp.eq.s32.totalorder %s25, 3
      %p57 = por %p55, %p56
      %p58 = scmp.ne.s32.totalorder %s47, %s48
      %p59 = scmp.eq.s32.totalorder %s25, 0
      %p60 = por %p58, %p59
      %p61 = scmp.ne.s32.totalorder %s47, %s48
      %p62 = scmp.eq.s32.totalorder %s26, 3
      %p63 = por %p61, %p62
      %p65 = scmp.ne.s32.totalorder %s48, %s64
      %p66 = scmp.eq.s32.totalorder %s26, 0
      %p67 = por %p65, %p66
      %s69 = sadd.s32 %s68, 1
      %p72 = scmp.eq.s32.totalorder %s20, 3
      %p73 = scmp.ne.s32.totalorder %s68, %s70
      %p74 = scmp.eq.s32.totalorder %s20, 0
      %p75 = por %p73, %p74
      %p76 = scmp.ne.s32.totalorder %s68, %s70
      %p77 = scmp.eq.s32.totalorder %s25, 3
      %p78 = por %p76, %p77
      %p79 = scmp.ne.s32.totalorder %s70, %s71
      %p80 = scmp.eq.s32.totalorder %s25, 0
      %p81 = por %p79, %p80
      %p82 = scmp.ne.s32.totalorder %s70, %s71
      %p83 = scmp.eq.s32.totalorder %s26, 3
      %p84 = por %p82, %p83
      %p86 = scmp.ne.s32.totalorder %s71, %s85
      %p87 = scmp.eq.s32.totalorder %s26, 0
      %p88 = por %p86, %p87
      %s90 = sadd.s32 %s89, 1
      %p93 = scmp.eq.s32.totalorder %s20, 3
      %p94 = scmp.ne.s32.totalorder %s89, %s91
      %p95 = scmp.eq.s32.totalorder %s20, 0
      %p96 = por %p94, %p95
      %p97 = scmp.ne.s32.totalorder %s89, %s91
      %p98 = scmp.eq.s32.totalorder %s25, 3
      %p99 = por %p97, %p98
      %p100 = scmp.ne.s32.totalorder %s91, %s92
      %p101 = scmp.eq.s32.totalorder %s25, 0
      %p102 = por %p100, %p101
      %p103 = scmp.ne.s32.totalorder %s91, %s92
      %p104 = scmp.eq.s32.totalorder %s26, 3
      %p105 = por %p103, %p104
      %p107 = scmp.ne.s32.totalorder %s92, %s106
      %p108 = scmp.eq.s32.totalorder %s26, 0
      %p109 = por %p107, %p108
      %s110 = ssub.s32 %s27, %s39
      %s111 = ssub.s32 %s28, %s35
      %s112 = sor.u32 %s110, %s111
      %p113 = scmp.eq.s32.totalorder %s112, 0
      %s115 = sadd.s32 %s114, 1
      %s116 = scalar_select %p113, %s114, %s115
      %p119 = pneg %p113
      %p120 = scmp.eq.s32.totalorder %s20, 3
      %p121 = por %p119, %p120
      %p122 = scmp.ne.s32.totalorder %s114, %s117
      %p123 = scmp.eq.s32.totalorder %s20, 0
      %p124 = por %p122, %p123
      %p125 = scmp.ne.s32.totalorder %s114, %s117
      %p126 = scmp.eq.s32.totalorder %s25, 3
      %p127 = por %p125, %p126
      %p128 = scmp.ne.s32.totalorder %s117, %s118
      %p129 = scmp.eq.s32.totalorder %s25, 0
      %p130 = por %p128, %p129
      %p131 = scmp.ne.s32.totalorder %s117, %s118
      %p132 = scmp.eq.s32.totalorder %s26, 3
      %p133 = por %p131, %p132
      %p135 = scmp.ne.s32.totalorder %s118, %s134
      %p136 = scmp.eq.s32.totalorder %s26, 0
      %p137 = por %p135, %p136
      %s138 = ssub.s32 %s27, %s39
      %s139 = ssub.s32 %s28, %s35
      %s140 = sor.u32 %s138, %s139
      %p141 = scmp.eq.s32.totalorder %s140, 0
      %s143 = sadd.s32 %s142, 1
      %s144 = scalar_select %p141, %s142, %s143
      %p147 = pneg %p141
      %p148 = scmp.eq.s32.totalorder %s20, 3
      %p149 = por %p147, %p148
      %p150 = scmp.ne.s32.totalorder %s142, %s145
      %p151 = scmp.eq.s32.totalorder %s20, 0
      %p152 = por %p150, %p151
      %p153 = scmp.ne.s32.totalorder %s142, %s145
      %p154 = scmp.eq.s32.totalorder %s25, 3
      %p155 = por %p153, %p154
      %p156 = scmp.ne.s32.totalorder %s145, %s146
      %p157 = scmp.eq.s32.totalorder %s25, 0
      %p158 = por %p156, %p157
      %p159 = scmp.ne.s32.totalorder %s145, %s146
      %p160 = scmp.eq.s32.totalorder %s26, 3
      %p161 = por %p159, %p160
      %p163 = scmp.ne.s32.totalorder %s146, %s162
      %p164 = scmp.eq.s32.totalorder %s26, 0
      %p165 = por %p163, %p164
      %p166 = scmp.le.s32.totalorder 1, %s20
      %p167 = scmp.lt.s32.totalorder %s20, 5
      %p168 = pnand %p166, %p167
      %p169 = pneg %p168
      // Predicated region
      $region9: #{tpu_custom_call.1} parent=5 // pred_check
        _
      $region10: #{tpu_custom_call.1} parent=5 // pred_check_branch
        %171 = sbr.rel (%p168) target = $region12
      $region11: #{tpu_custom_call.1} parent=5 // pred_region
        %s172 = ssub.s32 %s20, 1
        // Predicated region
        $region13: #{tpu_custom_call.1} parent=11 // pred_check
          %p173 = pneg %p81
        $region14: #{tpu_custom_call.1} parent=11 // pred_check_branch
          %175 = sbr.rel (%p173) target = $region16
        $region15: #{tpu_custom_call.1} parent=11 // pred_region
          _
        $region16: #{tpu_custom_call.1} parent=11 // pred_fallthru
          _
        // Predicated region
        $region17: #{tpu_custom_call.1} parent=11 // pred_check
          %p176 = pneg %p102
        $region18: #{tpu_custom_call.1} parent=11 // pred_check_branch
          %178 = sbr.rel (%p176) target = $region20
        $region19: #{tpu_custom_call.1} parent=11 // pred_region
          _
        $region20: #{tpu_custom_call.1} parent=11 // pred_fallthru
          _
      $region12: #{tpu_custom_call.1} parent=5 // pred_fallthru
        _
      %p179 = scmp.lt.s32.totalorder %s20, 4
      // Predicated region
      $region21: #{tpu_custom_call.1} parent=5 // pred_check
        %p180 = pneg %p179
      $region22: #{tpu_custom_call.1} parent=5 // pred_check_branch
        %182 = sbr.rel (%p180) target = $region24
      $region23: #{tpu_custom_call.1} parent=5 // pred_region
        // Predicated region
        $region25: #{tpu_custom_call.1} parent=23 // pred_check
          %p183 = pneg %p54
        $region26: #{tpu_custom_call.1} parent=23 // pred_check_branch
          %185 = sbr.rel (%p183) target = $region28
        $region27: #{tpu_custom_call.1} parent=23 // pred_region
          %s186 = sand.u32 %s44, 1
          %s187 = scalar_lea.sflag [#allocation3], %s186
          %s188 = sand.u32 %s44, 1
          %s189 = smul.addr %s188, 16
          %s190 = scalar_lea.vmem [#allocation2], %s189
          %s192 = ssub.s32 256, 256
          %193 = vsyncadd %s187, %s192
          %s194 = smul.addr %s27, 8
          %s195 = sadd.s32 %s28, %s194
          %s196 = smul.addr %s195, 64
          %s197 = scalar_lea.hbm %s0, %s196
          %s198 = sshll.u32 %s190, 4
          %s199 = int_to_ptr.vmem [resolvable:$true] %s198
          %204 = dma.hbm_to_vmem [thread:$0]  %s197, 256, %s199, %s187, 128, 64, 4
        $region28: #{tpu_custom_call.1} parent=23 // pred_fallthru
          _
      $region24: #{tpu_custom_call.1} parent=5 // pred_fallthru
        _
      %p205 = scmp.le.s32.totalorder 1, %s20
      %p206 = scmp.lt.s32.totalorder %s20, 5
      %p207 = pnand %p205, %p206
      %p208 = pneg %p207
      // Predicated region
      $region29: #{tpu_custom_call.1} parent=5 // pred_check
        _
      $region30: #{tpu_custom_call.1} parent=5 // pred_check_branch
        %210 = sbr.rel (%p207) target = $region32
      $region31: #{tpu_custom_call.1} parent=5 // pred_region
        %s211 = ssub.s32 %s20, 1
        %s212 = sand.u32 %s47, 1
        %s213 = scalar_lea.sflag [#allocation3], %s212
        %s214 = sand.u32 %s47, 1
        %s215 = smul.addr %s214, 16
        %s216 = scalar_lea.vmem [#allocation2], %s215
        // Predicated region
        $region33: #{tpu_custom_call.1} parent=31 // pred_check
          %p217 = pneg %p60
        $region34: #{tpu_custom_call.1} parent=31 // pred_check_branch
          %219 = sbr.rel (%p217) target = $region36
        $region35: #{tpu_custom_call.1} parent=31 // pred_region
          %220 = dma.done %s213, 256
        $region36: #{tpu_custom_call.1} parent=31 // pred_fallthru
          _
        %s221 = sand.u32 %s47, 1
        %s222 = scalar_lea.sflag [#allocation3], %s221
        %s223 = sand.u32 %s47, 1
        %s224 = smul.addr %s223, 16
        %s225 = scalar_lea.vmem [#allocation2], %s224
        %p226 = pneg %p60
        %p227 = pneg %p57
        %p228 = pneg %p81
        %p229 = pneg %p78
        %p230 = pneg %p102
        %p231 = pneg %p99
        %p232 = pneg %p130
        %p233 = pneg %p127
        %s234 = sand.u32 %s117, 1
        %s235 = scalar_lea.sflag [#allocation4], %s234
        %s236 = sand.u32 %s117, 1
        %s237 = smul.addr %s236, 16
        %s238 = scalar_lea.vmem [#allocation5], %s237
        %p239 = pneg %p158
        %p240 = pneg %p155
        %s241 = sand.u32 %s145, 1
        %s242 = scalar_lea.sflag [#allocation7], %s241
        %s243 = sand.u32 %s145, 1
        %s244 = smul.addr %s243, 16
        %s245 = scalar_lea.vmem [#allocation6], %s244
        %v247 = vld [vmem:[%s216] sm:$0xf]
        %v248 = vld [vmem:[%s216 + $0x4] sm:$0xf]
        %v249 = vld [vmem:[%s216 + $0x8] sm:$0xf]
        %v250 = vld [vmem:[%s216 + $0xc] sm:$0xf]
        %v251 = vld [vmem:[%s1] sm:$0xf]
        %v252 = vld [vmem:[%s1 + $0x4] sm:$0xf]
        %v253 = vld [vmem:[%s1 + $0x8] sm:$0xf]
        %v254 = vld [vmem:[%s1 + $0xc] sm:$0xf]
        %v255 = vld [vmem:[%s2] sm:$0xff]
        %v256 = vld [vmem:[%s2 + $0x8] sm:$0xff]
        %v257 = vld [vmem:[%s2 + $0x10] sm:$0xff]
        %v258 = vld [vmem:[%s2 + $0x18] sm:$0xff]
        %260 = vset.pattern.permute.xlu0 0
        %261 = vperm.xlu0 %260, %v255
        %v262 = vpop.permute.xlu0 %261
        %265 = vset.pattern.permute.xlu0 0
        %266 = vperm.xlu0 %265, %v256
        %v267 = vpop.permute.xlu0 %266
        %270 = vset.pattern.permute.xlu0 0
        %271 = vperm.xlu0 %270, %v257
        %v272 = vpop.permute.xlu0 %271
        %275 = vset.pattern.permute.xlu0 0
        %276 = vperm.xlu0 %275, %v258
        %v277 = vpop.permute.xlu0 %276
        %v283 = vunpack.c.l.b16 %v251
        %v284 = vunpack.c.l.b16 %v252
        %v285 = vunpack.c.l.b16 %v253
        %v286 = vunpack.c.l.b16 %v254
        %v287 = vpack.c.b16 %v284, %v283
        %v288 = vpack.c.b16 %v286, %v285
        %v293 = vunpack.c.l.b16 %v247
        %v294 = vunpack.c.l.b16 %v248
        %v295 = vunpack.c.l.b16 %v249
        %v296 = vunpack.c.l.b16 %v250
        %v297 = vpack.c.b16 %v294, %v293
        %v298 = vpack.c.b16 %v296, %v295
        %vm301 = vcmask 261120
        %v303 = vsel %vm301, %v287, 0
        %v306 = vsel %vm301, %v288, 0
        %308 = vmatprep.subr.bf16.mxu0 0
        %309 = vmatpush1.bf16.msra.mxu0 %v297
        %310 = vmatprep.subr.bf16.mxu0 0
        %311 = vmatpush1.bf16.msra.mxu0 %v298
        %312 = vmatprep.subr.bf16.mxu0 0
        %313 = vmatpush1.bf16.msra.mxu0 0
        %314 = vmatprep.subr.bf16.mxu0 0
        %315 = vmatpush1.bf16.msra.mxu0 0
        %316 = vmatprep.subr.bf16.mxu0 0
        %317 = vmatpush1.bf16.msra.mxu0 0
        %318 = vmatprep.subr.bf16.mxu0 0
        %319 = vmatpush1.bf16.msra.mxu0 0
        %320 = vmatprep.subr.bf16.mxu0 0
        %321 = vmatpush1.bf16.msra.mxu0 0
        %322 = vmatprep.subr.bf16.mxu0 0
        %323 = vmatpush1.bf16.msra.mxu0 0
        %324 = vmatprep.subr.bf16.mxu0 0
        %325 = vmatpush1.bf16.msra.mxu0 0
        %326 = vmatprep.subr.bf16.mxu0 0
        %327 = vmatpush1.bf16.msra.mxu0 0
        %328 = vmatprep.subr.bf16.mxu0 0
        %329 = vmatpush1.bf16.msra.mxu0 0
        %330 = vmatprep.subr.bf16.mxu0 0
        %331 = vmatpush1.bf16.msra.mxu0 0
        %332 = vmatprep.subr.bf16.mxu0 0
        %333 = vmatpush1.bf16.msra.mxu0 0
        %334 = vmatprep.subr.bf16.mxu0 0
        %335 = vmatpush1.bf16.msra.mxu0 0
        %336 = vmatprep.subr.bf16.mxu0 0
        %337 = vmatpush1.bf16.msra.mxu0 0
        %338 = vmatprep.subr.bf16.mxu0 0
        %339 = vmatpush1.bf16.msra.mxu0 0
        %340 = vmatprep.mubr.bf16.mxu0 0
        %341 = vmatmul.mubr.bf16.gmra.mrb[0].mxu0 %v303
        %v342 = vpop.f32.mrb[0].mxu0
        %v343 = vadd.f32 %v262, %v342
        %v344 = vpop.f32.mrb[0].mxu0
        %v345 = vpop.f32.mrb[0].mxu0
        %v346 = vadd.f32 %v267, %v345
        %v347 = vpop.f32.mrb[0].mxu0
        %348 = vmatprep.mubr.bf16.mxu0 0
        %349 = vmatmul.mubr.bf16.gmra.mrb[0].mxu0 %v306
        %v350 = vpop.f32.mrb[0].mxu0
        %v351 = vadd.f32 %v272, %v350
        %v352 = vpop.f32.mrb[0].mxu0
        %v353 = vpop.f32.mrb[0].mxu0
        %v354 = vadd.f32 %v277, %v353
        %v355 = vpop.f32.mrb[0].mxu0
        %356 = vdwg.mxu0
        %357 = vst [vmem:[%s238] sm:$0xff] %v343
        %358 = vst [vmem:[%s238 + $0x8] sm:$0xff] %v346
        %359 = vst [vmem:[%s245] sm:$0xff] %v351
        %360 = vst [vmem:[%s245 + $0x8] sm:$0xff] %v354
        %s361 = sand.u32 %s117, 1
        %s362 = scalar_lea.sflag [#allocation4], %s361
        %s363 = sand.u32 %s117, 1
        %s364 = smul.addr %s363, 16
        %s365 = scalar_lea.vmem [#allocation5], %s364
        %s366 = sand.u32 %s145, 1
        %s367 = scalar_lea.sflag [#allocation7], %s366
        %s368 = sand.u32 %s145, 1
        %s369 = smul.addr %s368, 16
        %s370 = scalar_lea.vmem [#allocation6], %s369
        // Predicated region
        $region37: #{tpu_custom_call.1} parent=31 // pred_check
          %p371 = pneg %p127
        $region38: #{tpu_custom_call.1} parent=31 // pred_check_branch
          %373 = sbr.rel (%p371) target = $region40
        $region39: #{tpu_custom_call.1} parent=31 // pred_region
          %s375 = ssub.s32 256, 256
          %376 = vsyncadd %s362, %s375
          %s377 = smul.addr %s29, 4
          %s378 = sadd.s32 %s30, %s377
          %s379 = smul.addr %s378, 128
          %s380 = scalar_lea.hbm %s3, %s379
          %s381 = sshll.u32 %s365, 4
          %s382 = int_to_ptr.vmem [resolvable:$true] %s381
          %387 = dma.vmem_to_hbm [thread:$0]  %s382, 256, %s380, %s362, 128, 256, 8
        $region40: #{tpu_custom_call.1} parent=31 // pred_fallthru
          _
        // Predicated region
        $region41: #{tpu_custom_call.1} parent=31 // pred_check
          %p388 = pneg %p155
        $region42: #{tpu_custom_call.1} parent=31 // pred_check_branch
          %390 = sbr.rel (%p388) target = $region44
        $region43: #{tpu_custom_call.1} parent=31 // pred_region
          %s392 = ssub.s32 256, 256
          %393 = vsyncadd %s367, %s392
          %s394 = smul.addr %s29, 4
          %s395 = sadd.s32 %s30, %s394
          %s396 = smul.addr %s395, 128
          %s397 = scalar_lea.hbm %s4, %s396
          %s398 = sshll.u32 %s370, 4
          %s399 = int_to_ptr.vmem [resolvable:$true] %s398
          %404 = dma.vmem_to_hbm [thread:$0]  %s399, 256, %s397, %s367, 128, 256, 8
        $region44: #{tpu_custom_call.1} parent=31 // pred_fallthru
          _
      $region32: #{tpu_custom_call.1} parent=5 // pred_fallthru
        _
      %p405 = scmp.le.s32.totalorder 2, %s20
      // Predicated region
      $region45: #{tpu_custom_call.1} parent=5 // pred_check
        %p406 = pneg %p405
      $region46: #{tpu_custom_call.1} parent=5 // pred_check_branch
        %408 = sbr.rel (%p406) target = $region48
      $region47: #{tpu_custom_call.1} parent=5 // pred_region
        %s409 = ssub.s32 %s20, 2
        // Predicated region
        $region49: #{tpu_custom_call.1} parent=47 // pred_check
          %p410 = pneg %p133
        $region50: #{tpu_custom_call.1} parent=47 // pred_check_branch
          %412 = sbr.rel (%p410) target = $region52
        $region51: #{tpu_custom_call.1} parent=47 // pred_region
          %s413 = sand.u32 %s118, 1
          %s414 = scalar_lea.sflag [#allocation4], %s413
          %s415 = sand.u32 %s118, 1
          %s416 = smul.addr %s415, 16
          %s417 = scalar_lea.vmem [#allocation5], %s416
          %418 = dma.done %s414, 256
        $region52: #{tpu_custom_call.1} parent=47 // pred_fallthru
          _
        // Predicated region
        $region53: #{tpu_custom_call.1} parent=47 // pred_check
          %p419 = pneg %p161
        $region54: #{tpu_custom_call.1} parent=47 // pred_check_branch
          %421 = sbr.rel (%p419) target = $region56
        $region55: #{tpu_custom_call.1} parent=47 // pred_region
          %s422 = sand.u32 %s146, 1
          %s423 = scalar_lea.sflag [#allocation7], %s422
          %s424 = sand.u32 %s146, 1
          %s425 = smul.addr %s424, 16
          %s426 = scalar_lea.vmem [#allocation6], %s425
          %427 = dma.done %s423, 256
        $region56: #{tpu_custom_call.1} parent=47 // pred_fallthru
          _
      $region48: #{tpu_custom_call.1} parent=5 // pred_fallthru
        _
    $region6: #{tpu_custom_call.1} parent=1 // loop_footer
      %s24 = sadd.s32 1, %s20
    $region7: #{tpu_custom_call.1} parent=1 // loop_footer_branch
      %19 = sbr.rel target = $region3
    $region8: #{tpu_custom_call.1} parent=1 // loop_exit
      _
    %428 = vsyncpa [#allocation3], 1
    %s429 = scalar_lea.sflag [#allocation3], 1
    %430 = vsyncpa %s429, 1
    %431 = vsyncpa [#allocation4], 1
    %s432 = scalar_lea.sflag [#allocation4], 1
    %433 = vsyncpa %s432, 1
    %434 = vsyncpa [#allocation7], 1
    %s435 = scalar_lea.sflag [#allocation7], 1
    %436 = vsyncpa %s435, 1

</llo_original>
